<compile_context>
chip_gen: v6e
topology: v6e:2x2x1
jax: 0.10.0
libtpu: 0.0.40
codegen_flags: <defaults>
</compile_context>

<pallas_src>
import functools

import jax
import jax.numpy as jnp
from jax.experimental import pallas as pl
from jax.experimental.pallas import tpu as pltpu


# --------------------------------------------------------------------------
# Hardware-aware knobs
# --------------------------------------------------------------------------
def _vmem_capacity_bytes():
    try:
        return int(pltpu.get_tpu_info().vmem_capacity_bytes)
    except Exception:
        return 128 << 20  # assume a 128 MiB part if the query is unavailable


def _vmem_budget_bytes(capacity):
    # 128 MiB parts (v5e / v6e): let the pipeline use ~100 MiB.
    # 64 MiB parts (v7x): keep ~28% headroom for compiler scratch / semaphores.
    if capacity >= (100 << 20):
        return 100 << 20
    return int(capacity * 0.72)


def _pick_tile(dim, target, aligns):
    """Largest tile <= target dividing `dim`, preferring the listed alignments."""
    if dim <= target:
        return dim
    for a in aligns:
        t = (min(target, dim) // a) * a
        while t >= a:
            if dim % t == 0:
                return t
            t -= a
    return dim  # ragged fallback: run the whole dim as a single (legal) block


def _footprint_bytes(tm, th, d, act_isz, w_isz):
    # Double-buffered input/output blocks + resident f32 accumulator.
    return (2 * tm * d * act_isz        # x blocks
            + 2 * 2 * d * th * w_isz    # w1 + w3 tile blocks
            + 2 * th * d * w_isz        # w2 tile blocks
            + 2 * tm * d * 4            # out blocks (<= f32 in the split path)
            + tm * d * 4)               # accumulator scratch


# --------------------------------------------------------------------------
# Kernels
# --------------------------------------------------------------------------
def _mlp_step(x_ref, w1_ref, w3_ref, w2_ref, acc_ref):
    """One (token-tile, hidden-tile) step; returns 'is last hidden tile'."""
    h = pl.program_id(1)  # hidden/ffn reduction axis (innermost)

    @pl.when(h == 0)
    def _():
        acc_ref[...] = jnp.zeros_like(acc_ref)

    x = x_ref[...]                                                      # (tm, D)
    gate = jnp.dot(x, w1_ref[0], preferred_element_type=jnp.float32)   # (tm, th)
    up = jnp.dot(x, w3_ref[0], preferred_element_type=jnp.float32)     # (tm, th)
    # SiLU(gate) * up, cast to weight dtype for the MXU down-projection
    # (f32 accumulation keeps the error well under bf16 output precision).
    w2_in = (gate * jax.nn.sigmoid(gate) * up).astype(w2_ref.dtype)
    acc_ref[...] += jnp.dot(w2_in, w2_ref[...], preferred_element_type=jnp.float32)
    return h == pl.num_programs(1) - 1


def _mlp_kernel(x_ref, w1_ref, w3_ref, w2_ref, o_ref, acc_ref):
    last = _mlp_step(x_ref, w1_ref, w3_ref, w2_ref, acc_ref)

    @pl.when(last)
    def _():
        o_ref[...] = acc_ref[...].astype(o_ref.dtype)


def _mlp_split_kernel(x_ref, w1_ref, w3_ref, w2_ref, o_ref, acc_ref):
    # Per-core partial sum over half of the hidden dim (v7x decode: each
    # TensorCore streams half the weights); partials are summed outside.
    last = _mlp_step(x_ref, w1_ref, w3_ref, w2_ref, acc_ref)

    @pl.when(last)
    def _():
        o_ref[0] = acc_ref[...].astype(o_ref.dtype)


# --------------------------------------------------------------------------
# Wrappers
# --------------------------------------------------------------------------
def prepare_mixtral_mlp_weights(w1, w2, w3, *, th=None):
    """One-time weight re-layout. Call once at weight-load time, NOT per step.

    w1, w3: [D, H] (gate/up proj, already transposed as in the module); w2: [H, D].
    Returns (w1t, w3t, w2) with w1t/w3t tile-major [Hn, D, th] so each grid
    step's weight DMA is one contiguous block.  The kernel derives (Hn, th)
    from the prepared shapes, so a tile-size mismatch is impossible.
    """
    d, hdim = w1.shape
    assert w3.shape == (d, hdim) and w2.shape == (hdim, d)
    assert d % 128 == 0 and hdim % 128 == 0, "dims must be lane-aligned (x128)"
    if th is None:
        cap = _vmem_capacity_bytes()
        th = _pick_tile(hdim, 1024 if cap >= (100 << 20) else 512, (512, 256, 128))
    assert hdim % th == 0 and th % 128 == 0
    hn = hdim // th
    w1t = jnp.transpose(w1.reshape(d, hn, th), (1, 0, 2))  # [Hn, D, th]
    w3t = jnp.transpose(w3.reshape(d, hn, th), (1, 0, 2))  # [Hn, D, th]
    return w1t, w3t, w2


@functools.partial(jax.jit, static_argnames=("tm", "split"))
def mixtral_mlp_prepared(x, w1t, w3t, w2, *, tm=None, split=None):
    m, d = x.shape
    hn, dw, th = w1t.shape
    hdim = hn * th
    assert dw == d and w3t.shape == (hn, d, th) and w2.shape == (hdim, d)

    cap = _vmem_capacity_bytes()
    budget = _vmem_budget_bytes(cap)
    act_isz = jnp.dtype(x.dtype).itemsize
    w_isz = jnp.dtype(w1t.dtype).itemsize

    if tm is None:
        # Token tile: large enough to hit the compute roofline for prefill on
        # the given generation, sublane (x16) / MXU-row (x256) aligned.
        tm_target = 512 if budget >= (100 << 20) else 256
        tm = _pick_tile(m, tm_target, (256, 128, 16, 8))
    # Safety net: shrink tm until double-buffered tiles + accumulator fit VMEM.
    while (_footprint_bytes(tm, th, d, act_isz, w_isz) > budget
           and tm > 16 and tm % 16 == 0 and m % (tm // 2) == 0):
        tm //= 2
    assert m % tm == 0
    mn = m // tm

    est = _footprint_bytes(tm, th, d, act_isz, w_isz)
    vmem_limit = min(budget, max(int(est * 1.2) + (4 << 20), 16 << 20))

    if split is None:
        # 2-way hidden-dim split only pays off on 2-TensorCore parts (v7x,
        # identified via its 64 MiB VMEM) when the token axis has no parallelism.
        split = (cap < (100 << 20)) and mn == 1 and hn >= 2 and hn % 2 == 0
    split = bool(split) and mn == 1 and hn >= 2 and hn % 2 == 0

    if not split:
        return pl.pallas_call(
            _mlp_kernel,
            out_shape=jax.ShapeDtypeStruct((m, d), x.dtype),
            grid_spec=pltpu.PrefetchScalarGridSpec(
                num_scalar_prefetch=0,
                grid=(mn, hn),
                in_specs=[
                    pl.BlockSpec((tm, d), lambda i, h: (i, 0)),        # x token tile
                    pl.BlockSpec((1, d, th), lambda i, h: (h, 0, 0)),  # w1 tile (contiguous)
                    pl.BlockSpec((1, d, th), lambda i, h: (h, 0, 0)),  # w3 tile (contiguous)
                    pl.BlockSpec((th, d), lambda i, h: (h, 0)),        # w2 tile (contiguous)
                ],
                out_specs=pl.BlockSpec((tm, d), lambda i, h: (i, 0)),
                scratch_shapes=[pltpu.VMEM((tm, d), jnp.float32)],
            ),
            compiler_params=pltpu.CompilerParams(
                dimension_semantics=("parallel", "arbitrary"),
                vmem_limit_bytes=vmem_limit,
            ),
        )(x, w1t, w3t, w2)

    # Decode / small-batch path: split the hidden reduction across the two v7x
    # TensorCores; each core writes an f32 partial, summed by one tiny add.
    hn2 = hn // 2
    partial = pl.pallas_call(
        _mlp_split_kernel,
        out_shape=jax.ShapeDtypeStruct((2, m, d), jnp.float32),
        grid_spec=pltpu.PrefetchScalarGridSpec(
            num_scalar_prefetch=0,
            grid=(2, hn2),
            in_specs=[
                pl.BlockSpec((tm, d), lambda c, h: (0, 0)),
                pl.BlockSpec((1, d, th), lambda c, h: (c * hn2 + h, 0, 0)),
                pl.BlockSpec((1, d, th), lambda c, h: (c * hn2 + h, 0, 0)),
                pl.BlockSpec((th, d), lambda c, h: (c * hn2 + h, 0)),
            ],
            out_specs=pl.BlockSpec((1, tm, d), lambda c, h: (c, 0, 0)),
            scratch_shapes=[pltpu.VMEM((tm, d), jnp.float32)],
        ),
        compiler_params=pltpu.CompilerParams(
            dimension_semantics=("parallel", "arbitrary"),
            vmem_limit_bytes=vmem_limit,
        ),
    )(x, w1t, w3t, w2)
    return (partial[0] + partial[1]).astype(x.dtype)


def mixtral_mlp(x, w1, w2, w3, *, tm=None, th=None, split=None):
    """Convenience wrapper matching the module's weight layout.

    In production, call prepare_mixtral_mlp_weights() once at load time and
    reuse the prepared weights for every forward step (do NOT re-prepare).
    """
    w1t, w3t, w2c = prepare_mixtral_mlp_weights(w1, w2, w3, th=th)
    return mixtral_mlp_prepared(x, w1t, w3t, w2c, tm=tm, split=split)


def _reference(x, w1, w2, w3):
    xf = x.astype(jnp.float32)
    g = xf @ w1.astype(jnp.float32)
    u = xf @ w3.astype(jnp.float32)
    return ((g * jax.nn.sigmoid(g)) * u) @ w2.astype(jnp.float32)


if __name__ == "__main__":
    key = jax.random.PRNGKey(0)
    kx1, kx2, k1, k2, k3 = jax.random.split(key, 5)
    dtype = jnp.bfloat16

    # Small shapes consistent with the module (Mixtral real: D=4096, H=14336).
    D, H = 128, 512
    w1 = (jax.random.normal(k1, (D, H), jnp.float32) * 0.05).astype(dtype)  # gate_proj^T
    w2 = (jax.random.normal(k2, (H, D), jnp.float32) * 0.05).astype(dtype)  # down_proj^T
    w3 = (jax.random.normal(k3, (D, H), jnp.float32) * 0.05).astype(dtype)  # up_proj^T

    # One-time weight preparation (tile-major layout), outside the per-step jit.
    w1t, w3t, w2p = prepare_mixtral_mlp_weights(w1, w2, w3, th=128)

    # 1) Prefill-like call: token tiling (Mn > 1) + hidden-dim reduction.
    M = 32
    x = (jax.random.normal(kx1, (M, D), jnp.float32) * 0.5).astype(dtype)
    out = jax.block_until_ready(
        mixtral_mlp_prepared(x, w1t, w3t, w2p, tm=16, split=False))
    ref = _reference(x, w1, w2, w3)
    err = float(jnp.max(jnp.abs(out.astype(jnp.float32) - ref)))
    assert out.shape == (M, D) and out.dtype == dtype
    assert err < 5e-2, f"prefill path max abs error too large: {err}"

    # 2) Decode-like call: single token tile, hidden reduction split into two
    #    partial sums (the v7x two-TensorCore path), forced here so the path is
    #    exercised on any generation.
    Md = 8
    xd = (jax.random.normal(kx2, (Md, D), jnp.float32) * 0.5).astype(dtype)
    outd = jax.block_until_ready(
        mixtral_mlp_prepared(xd, w1t, w3t, w2p, split=True))
    refd = _reference(xd, w1, w2, w3)
    errd = float(jnp.max(jnp.abs(outd.astype(jnp.float32) - refd)))
    assert outd.shape == (Md, D) and outd.dtype == dtype
    assert errd < 5e-2, f"decode/split path max abs error too large: {errd}"

    print("KERNEL_OK")
</pallas_src>

<mosaic_0001>
module attributes {stable_mosaic.version = 11 : i64} {
  func.func @_mlp_kernel(%arg0: i32, %arg1: i32, %arg2: memref<16x128xbf16, #tpu.memory_space<vmem>>, %arg3: memref<1x128x128xbf16, #tpu.memory_space<vmem>>, %arg4: memref<1x128x128xbf16, #tpu.memory_space<vmem>>, %arg5: memref<128x128xbf16, #tpu.memory_space<vmem>>, %arg6: memref<16x128xbf16, #tpu.memory_space<vmem>>, %arg7: memref<16x128xf32, #tpu.memory_space<vmem>>) attributes {dimension_semantics = [#tpu.dimension_semantics<parallel>, #tpu.dimension_semantics<arbitrary>], iteration_bounds = array<i64: 2, 4>, scalar_prefetch = 0 : i64, scratch_operands = 1 : i64, tpu.core_type = #tpu.core_type<tc>, window_params = [{transform_indices = @transform_0, window_bounds = array<i64: 16, 128>}, {transform_indices = @transform_1, window_bounds = array<i64: 1, 128, 128>}, {transform_indices = @transform_2, window_bounds = array<i64: 1, 128, 128>}, {transform_indices = @transform_3, window_bounds = array<i64: 128, 128>}, {transform_indices = @transform_4, window_bounds = array<i64: 16, 128>}]} {
    %c0_i32 = arith.constant 0 : i32
    %0 = arith.cmpi eq, %arg1, %c0_i32 : i32
    %1 = arith.extui %0 : i1 to i32
    %c0_i32_0 = arith.constant 0 : i32
    %2 = arith.cmpi ne, %1, %c0_i32_0 : i32
    scf.if %2 {
      %cst_18 = arith.constant 0.000000e+00 : f32
      %26 = vector.broadcast %cst_18 : f32 to vector<16x128xf32>
      %c0_19 = arith.constant 0 : index
      %c0_20 = arith.constant 0 : index
      %27 = vector.load %arg7[%c0_19, %c0_20] : memref<16x128xf32, #tpu.memory_space<vmem>>, vector<16x128xf32>
      tpu.vector_store %arg7[%c0_19, %c0_20], %26 {strides = array<i32>} : memref<16x128xf32, #tpu.memory_space<vmem>>, vector<16x128xf32>,
    } else {
    }
    %c0 = arith.constant 0 : index
    %c0_1 = arith.constant 0 : index
    %3 = vector.load %arg2[%c0, %c0_1] : memref<16x128xbf16, #tpu.memory_space<vmem>>, vector<16x128xbf16>
    %c0_2 = arith.constant 0 : index
    %c0_3 = arith.constant 0 : index
    %c0_4 = arith.constant 0 : index
    %4 = vector.load %arg3[%c0_2, %c0_3, %c0_4] : memref<1x128x128xbf16, #tpu.memory_space<vmem>>, vector<1x128x128xbf16>
    %5 = vector.shape_cast %4 : vector<1x128x128xbf16> to vector<128x128xbf16>
    %cst = arith.constant dense<0.000000e+00> : vector<16x128xf32>
    %6 = tpu.matmul %3, %5, %cst {dimension_numbers = #tpu.dot_dimension_numbers<[1], [0], [0], [1], [0, 0, 1, 1], [], []>} : vector<16x128xbf16>, vector<128x128xbf16>, vector<16x128xf32> -> vector<16x128xf32>
    %c0_5 = arith.constant 0 : index
    %c0_6 = arith.constant 0 : index
    %c0_7 = arith.constant 0 : index
    %7 = vector.load %arg4[%c0_5, %c0_6, %c0_7] : memref<1x128x128xbf16, #tpu.memory_space<vmem>>, vector<1x128x128xbf16>
    %8 = vector.shape_cast %7 : vector<1x128x128xbf16> to vector<128x128xbf16>
    %cst_8 = arith.constant dense<0.000000e+00> : vector<16x128xf32>
    %9 = tpu.matmul %3, %8, %cst_8 {dimension_numbers = #tpu.dot_dimension_numbers<[1], [0], [0], [1], [0, 0, 1, 1], [], []>} : vector<16x128xbf16>, vector<128x128xbf16>, vector<16x128xf32> -> vector<16x128xf32>
    %10 = arith.negf %6 : vector<16x128xf32>
    %11 = math.exp %10 : vector<16x128xf32>
    %cst_9 = arith.constant 1.000000e+00 : f32
    %12 = vector.broadcast %cst_9 : f32 to vector<16x128xf32>
    %13 = arith.addf %12, %11 : vector<16x128xf32>
    %14 = arith.divf %12, %13 : vector<16x128xf32>
    %15 = arith.mulf %6, %14 : vector<16x128xf32>
    %16 = arith.mulf %15, %9 : vector<16x128xf32>
    %17 = arith.truncf %16 : vector<16x128xf32> to vector<16x128xbf16>
    %c0_10 = arith.constant 0 : index
    %c0_11 = arith.constant 0 : index
    %18 = vector.load %arg7[%c0_10, %c0_11] : memref<16x128xf32, #tpu.memory_space<vmem>>, vector<16x128xf32>
    %c0_12 = arith.constant 0 : index
    %c0_13 = arith.constant 0 : index
    %19 = vector.load %arg5[%c0_12, %c0_13] : memref<128x128xbf16, #tpu.memory_space<vmem>>, vector<128x128xbf16>
    %cst_14 = arith.constant dense<0.000000e+00> : vector<16x128xf32>
    %20 = tpu.matmul %17, %19, %cst_14 {dimension_numbers = #tpu.dot_dimension_numbers<[1], [0], [0], [1], [0, 0, 1, 1], [], []>} : vector<16x128xbf16>, vector<128x128xbf16>, vector<16x128xf32> -> vector<16x128xf32>
    %21 = arith.addf %18, %20 : vector<16x128xf32>
    %c0_15 = arith.constant 0 : index
    %c0_16 = arith.constant 0 : index
    %22 = vector.load %arg7[%c0_15, %c0_16] : memref<16x128xf32, #tpu.memory_space<vmem>>, vector<16x128xf32>
    tpu.vector_store %arg7[%c0_15, %c0_16], %21 {strides = array<i32>} : memref<16x128xf32, #tpu.memory_space<vmem>>, vector<16x128xf32>,
    %c3_i32 = arith.constant 3 : i32
    %23 = arith.cmpi eq, %arg1, %c3_i32 : i32
    %24 = arith.extui %23 : i1 to i32
    %c0_i32_17 = arith.constant 0 : i32
    %25 = arith.cmpi ne, %24, %c0_i32_17 : i32
    scf.if %25 {
      %c0_18 = arith.constant 0 : index
      %c0_19 = arith.constant 0 : index
      %26 = vector.load %arg7[%c0_18, %c0_19] : memref<16x128xf32, #tpu.memory_space<vmem>>, vector<16x128xf32>
      %27 = arith.truncf %26 : vector<16x128xf32> to vector<16x128xbf16>
      %c0_20 = arith.constant 0 : index
      %c0_21 = arith.constant 0 : index
      %28 = vector.load %arg6[%c0_20, %c0_21] : memref<16x128xbf16, #tpu.memory_space<vmem>>, vector<16x128xbf16>
      tpu.vector_store %arg6[%c0_20, %c0_21], %27 {strides = array<i32>} : memref<16x128xbf16, #tpu.memory_space<vmem>>, vector<16x128xbf16>,
    } else {
    }
    return
  }
  func.func @transform_0(%arg0: i32, %arg1: i32) -> (i32, i32) {
    %c0_i32 = arith.constant 0 : i32
    %c0_i32_0 = arith.constant 0 : i32
    return %arg0, %c0_i32 : i32, i32
  }
  func.func @transform_1(%arg0: i32, %arg1: i32) -> (i32, i32, i32) {
    %c0_i32 = arith.constant 0 : i32
    %c0_i32_0 = arith.constant 0 : i32
    %c0_i32_1 = arith.constant 0 : i32
    return %arg1, %c0_i32, %c0_i32_0 : i32, i32, i32
  }
  func.func @transform_2(%arg0: i32, %arg1: i32) -> (i32, i32, i32) {
    %c0_i32 = arith.constant 0 : i32
    %c0_i32_0 = arith.constant 0 : i32
    %c0_i32_1 = arith.constant 0 : i32
    return %arg1, %c0_i32, %c0_i32_0 : i32, i32, i32
  }
  func.func @transform_3(%arg0: i32, %arg1: i32) -> (i32, i32) {
    %c0_i32 = arith.constant 0 : i32
    %c0_i32_0 = arith.constant 0 : i32
    return %arg1, %c0_i32 : i32, i32
  }
  func.func @transform_4(%arg0: i32, %arg1: i32) -> (i32, i32) {
    %c0_i32 = arith.constant 0 : i32
    %c0_i32_0 = arith.constant 0 : i32
    return %arg0, %c0_i32 : i32, i32
  }
}

</mosaic_0001>

<llo_original>
// kernel: mixtral_mlp_prepared.1
$region0: #{mixtral_mlp_prepared.1}
  #allocation0 [shape = 'u32[]', space=smem, size = 0x4, offset = 0x4, fixed_abs, tag = 'smem constant byte address 0x4 - core index']
  #allocation1 [shape = 'u32[144,128]{1,0:T(1,128)}', space=vmem, size = 0x12000, scoped, tag = 'internal scratch']
  #allocation2 [shape = 'f32[16,128]{1,0:T(8,128)}', space=vmem, size = 0x2000, scoped, tag = 'scratch operand']
  %s0 = inlined_call_operand.hbm [shape: bf16[32,128], index: 0, kind: input, shape index: {}]
  %s1 = inlined_call_operand.hbm [shape: bf16[4,128,128], index: 1, kind: input, shape index: {}]
  %s2 = inlined_call_operand.hbm [shape: bf16[4,128,128], index: 2, kind: input, shape index: {}]
  %s3 = inlined_call_operand.hbm [shape: bf16[512,128], index: 3, kind: input, shape index: {}]
  %s4 = inlined_call_operand.hbm [shape: bf16[32,128], index: 4, kind: output, shape index: {}]
  %s5 = sld [smem:[#allocation0]]
  $region73: #{mixtral_mlp_prepared.1} parent=0
    _
  %s7 = ssub.s32 1, %s5
  %s8 = scalar_select 0, %s7, %s5
  $region1: #{mixtral_mlp_prepared.1} parent=0
    #allocation3 [shape = 'u8[8192]{0}', space=vmem, size = 0x2000, scoped, tag = 'input window, operand 0']
    #allocation4 [shape = 's32[2]{0}', space=sflag, size = 0x8, scoped, tag = 'scoped memory for mixtral_mlp_prepared.1']
    #allocation5 [shape = 's32[2]{0}', space=sflag, size = 0x8, scoped, tag = 'scoped memory for mixtral_mlp_prepared.1']
    #allocation6 [shape = 'u8[65536]{0}', space=vmem, size = 0x10000, scoped, tag = 'input window, operand 1']
    #allocation7 [shape = 's32[2]{0}', space=sflag, size = 0x8, scoped, tag = 'scoped memory for mixtral_mlp_prepared.1']
    #allocation8 [shape = 'u8[65536]{0}', space=vmem, size = 0x10000, scoped, tag = 'input window, operand 2']
    #allocation9 [shape = 'u8[65536]{0}', space=vmem, size = 0x10000, scoped, tag = 'input window, operand 3']
    #allocation10 [shape = 's32[2]{0}', space=sflag, size = 0x8, scoped, tag = 'scoped memory for mixtral_mlp_prepared.1']
    #allocation11 [shape = 'u8[8192]{0}', space=vmem, size = 0x2000, scoped, tag = 'output window, operand 0']
    %9 = vsyncpa [#allocation4], 0
    %s10 = scalar_lea.sflag [#allocation4], 1
    %11 = vsyncpa %s10, 0
    %12 = vsyncpa [#allocation7], 0
    %s13 = scalar_lea.sflag [#allocation7], 1
    %14 = vsyncpa %s13, 0
    %15 = vsyncpa [#allocation10], 0
    %s16 = scalar_lea.sflag [#allocation10], 1
    %17 = vsyncpa %s16, 0
    %18 = vsyncpa [#allocation5], 0
    %s19 = scalar_lea.sflag [#allocation5], 1
    %20 = vsyncpa %s19, 0
    loop: start=0, step=1, limit=10
    $region2: #{mixtral_mlp_prepared.1} parent=1 // loop_pre_header
      _
    $region3: #{mixtral_mlp_prepared.1} parent=1 // loop_header
      %s22 = sphi 0, %s26
      %p23 = scmp.ge.s32.totalorder %s22, 10
      %s29 = sphi 0, %s41
      %s30 = sphi 0, %s37
      %s31 = sphi 0, %s29
      %s32 = sphi 0, %s30
      %s33 = sphi 0, %s31
      %s34 = sphi 0, %s32
      %s44 = sphi 0, %s46
      %s47 = sphi 0, %s44
      %s48 = sphi 0, %s47
      %s64 = sphi 0, %s48
      %s70 = sphi 0, %s72
      %s73 = sphi 0, %s70
      %s74 = sphi 0, %s73
      %s90 = sphi 0, %s74
      %s96 = sphi 0, %s98
      %s99 = sphi 0, %s96
      %s100 = sphi 0, %s99
      %s116 = sphi 0, %s100
      %s122 = sphi 0, %s124
      %s125 = sphi 0, %s122
      %s126 = sphi 0, %s125
      %s142 = sphi 0, %s126
      %s148 = sphi 0, %s150
      %s151 = sphi 0, %s148
      %s152 = sphi 0, %s151
      %s168 = sphi 0, %s152
    $region4: #{mixtral_mlp_prepared.1} parent=1 // loop_header_branch
      %25 = sbr.rel (%p23) target = $region8
    $region5: #{mixtral_mlp_prepared.1} parent=1 // loop_body
      %s27 = ssub.s32 %s22, 1
      %s28 = ssub.s32 %s22, 2
      %s35 = sadd.s32 1, %s30
      %p36 = scmp.ge.s32.totalorder %s35, 4
      %s37 = scalar_select %p36, 0, %s35
      %s38 = sadd.s32 1, %s29
      %s39 = scalar_select %p36, %s38, %s29
      %p40 = scmp.ge.s32.totalorder %s39, 2
      %s41 = scalar_select %p40, 0, %s39
      %s42 = ssub.s32 %s29, %s41
      %p43 = scmp.eq.s32.totalorder %s42, 0
      %s45 = sadd.s32 %s44, 1
      %s46 = scalar_select %p43, %s44, %s45
      %p49 = pneg %p43
      %p50 = scmp.eq.s32.totalorder %s22, 7
      %p51 = por %p49, %p50
      %p52 = scmp.ne.s32.totalorder %s44, %s47
      %p53 = scmp.eq.s32.totalorder %s22, 0
      %p54 = por %p52, %p53
      %p55 = scmp.ne.s32.totalorder %s44, %s47
      %p56 = scmp.eq.s32.totalorder %s27, 7
      %p57 = por %p55, %p56
      %p58 = scmp.ne.s32.totalorder %s47, %s48
      %p59 = scmp.eq.s32.totalorder %s27, 0
      %p60 = por %p58, %p59
      %p61 = scmp.ne.s32.totalorder %s47, %s48
      %p62 = scmp.eq.s32.totalorder %s28, 7
      %p63 = por %p61, %p62
      %p65 = scmp.ne.s32.totalorder %s48, %s64
      %p66 = scmp.eq.s32.totalorder %s28, 0
      %p67 = por %p65, %p66
      %s68 = ssub.s32 %s30, %s37
      %p69 = scmp.eq.s32.totalorder %s68, 0
      %s71 = sadd.s32 %s70, 1
      %s72 = scalar_select %p69, %s70, %s71
      %p75 = pneg %p69
      %p76 = scmp.eq.s32.totalorder %s22, 7
      %p77 = por %p75, %p76
      %p78 = scmp.ne.s32.totalorder %s70, %s73
      %p79 = scmp.eq.s32.totalorder %s22, 0
      %p80 = por %p78, %p79
      %p81 = scmp.ne.s32.totalorder %s70, %s73
      %p82 = scmp.eq.s32.totalorder %s27, 7
      %p83 = por %p81, %p82
      %p84 = scmp.ne.s32.totalorder %s73, %s74
      %p85 = scmp.eq.s32.totalorder %s27, 0
      %p86 = por %p84, %p85
      %p87 = scmp.ne.s32.totalorder %s73, %s74
      %p88 = scmp.eq.s32.totalorder %s28, 7
      %p89 = por %p87, %p88
      %p91 = scmp.ne.s32.totalorder %s74, %s90
      %p92 = scmp.eq.s32.totalorder %s28, 0
      %p93 = por %p91, %p92
      %s94 = ssub.s32 %s30, %s37
      %p95 = scmp.eq.s32.totalorder %s94, 0
      %s97 = sadd.s32 %s96, 1
      %s98 = scalar_select %p95, %s96, %s97
      %p101 = pneg %p95
      %p102 = scmp.eq.s32.totalorder %s22, 7
      %p103 = por %p101, %p102
      %p104 = scmp.ne.s32.totalorder %s96, %s99
      %p105 = scmp.eq.s32.totalorder %s22, 0
      %p106 = por %p104, %p105
      %p107 = scmp.ne.s32.totalorder %s96, %s99
      %p108 = scmp.eq.s32.totalorder %s27, 7
      %p109 = por %p107, %p108
      %p110 = scmp.ne.s32.totalorder %s99, %s100
      %p111 = scmp.eq.s32.totalorder %s27, 0
      %p112 = por %p110, %p111
      %p113 = scmp.ne.s32.totalorder %s99, %s100
      %p114 = scmp.eq.s32.totalorder %s28, 7
      %p115 = por %p113, %p114
      %p117 = scmp.ne.s32.totalorder %s100, %s116
      %p118 = scmp.eq.s32.totalorder %s28, 0
      %p119 = por %p117, %p118
      %s120 = ssub.s32 %s30, %s37
      %p121 = scmp.eq.s32.totalorder %s120, 0
      %s123 = sadd.s32 %s122, 1
      %s124 = scalar_select %p121, %s122, %s123
      %p127 = pneg %p121
      %p128 = scmp.eq.s32.totalorder %s22, 7
      %p129 = por %p127, %p128
      %p130 = scmp.ne.s32.totalorder %s122, %s125
      %p131 = scmp.eq.s32.totalorder %s22, 0
      %p132 = por %p130, %p131
      %p133 = scmp.ne.s32.totalorder %s122, %s125
      %p134 = scmp.eq.s32.totalorder %s27, 7
      %p135 = por %p133, %p134
      %p136 = scmp.ne.s32.totalorder %s125, %s126
      %p137 = scmp.eq.s32.totalorder %s27, 0
      %p138 = por %p136, %p137
      %p139 = scmp.ne.s32.totalorder %s125, %s126
      %p140 = scmp.eq.s32.totalorder %s28, 7
      %p141 = por %p139, %p140
      %p143 = scmp.ne.s32.totalorder %s126, %s142
      %p144 = scmp.eq.s32.totalorder %s28, 0
      %p145 = por %p143, %p144
      %s146 = ssub.s32 %s29, %s41
      %p147 = scmp.eq.s32.totalorder %s146, 0
      %s149 = sadd.s32 %s148, 1
      %s150 = scalar_select %p147, %s148, %s149
      %p153 = pneg %p147
      %p154 = scmp.eq.s32.totalorder %s22, 7
      %p155 = por %p153, %p154
      %p156 = scmp.ne.s32.totalorder %s148, %s151
      %p157 = scmp.eq.s32.totalorder %s22, 0
      %p158 = por %p156, %p157
      %p159 = scmp.ne.s32.totalorder %s148, %s151
      %p160 = scmp.eq.s32.totalorder %s27, 7
      %p161 = por %p159, %p160
      %p162 = scmp.ne.s32.totalorder %s151, %s152
      %p163 = scmp.eq.s32.totalorder %s27, 0
      %p164 = por %p162, %p163
      %p165 = scmp.ne.s32.totalorder %s151, %s152
      %p166 = scmp.eq.s32.totalorder %s28, 7
      %p167 = por %p165, %p166
      %p169 = scmp.ne.s32.totalorder %s152, %s168
      %p170 = scmp.eq.s32.totalorder %s28, 0
      %p171 = por %p169, %p170
      %p172 = scmp.le.s32.totalorder 1, %s22
      %p173 = scmp.lt.s32.totalorder %s22, 9
      %p174 = pnand %p172, %p173
      %p175 = pneg %p174
      // Predicated region
      $region9: #{mixtral_mlp_prepared.1} parent=5 // pred_check
        _
      $region10: #{mixtral_mlp_prepared.1} parent=5 // pred_check_branch
        %177 = sbr.rel (%p174) target = $region12
      $region11: #{mixtral_mlp_prepared.1} parent=5 // pred_region
        %s178 = ssub.s32 %s22, 1
      $region12: #{mixtral_mlp_prepared.1} parent=5 // pred_fallthru
        _
      %p179 = scmp.lt.s32.totalorder %s22, 8
      // Predicated region
      $region13: #{mixtral_mlp_prepared.1} parent=5 // pred_check
        %p180 = pneg %p179
      $region14: #{mixtral_mlp_prepared.1} parent=5 // pred_check_branch
        %182 = sbr.rel (%p180) target = $region16
      $region15: #{mixtral_mlp_prepared.1} parent=5 // pred_region
        // Predicated region
        $region17: #{mixtral_mlp_prepared.1} parent=15 // pred_check
          %p183 = pneg %p54
        $region18: #{mixtral_mlp_prepared.1} parent=15 // pred_check_branch
          %185 = sbr.rel (%p183) target = $region20
        $region19: #{mixtral_mlp_prepared.1} parent=15 // pred_region
          %s186 = sand.u32 %s44, 1
          %s187 = scalar_lea.sflag [#allocation4], %s186
          %s188 = sand.u32 %s44, 1
          %s189 = smul.addr %s188, 8
          %s190 = scalar_lea.vmem [#allocation3], %s189
          %s191 = smul.u32 2, %s29
          %s193 = ssub.s32 128, 128
          %194 = vsyncadd %s187, %s193
          %s195 = smul.addr %s191, 64
          %s196 = scalar_lea.hbm %s0, %s195
          %s197 = sshll.u32 %s190, 4
          %s198 = int_to_ptr.vmem [resolvable:$true] %s197
          %203 = dma.hbm_to_vmem [thread:$0]  %s196, 128, %s198, %s187, 64, 64, 4
        $region20: #{mixtral_mlp_prepared.1} parent=15 // pred_fallthru
          _
        // Predicated region
        $region21: #{mixtral_mlp_prepared.1} parent=15 // pred_check
          %p204 = pneg %p80
        $region22: #{mixtral_mlp_prepared.1} parent=15 // pred_check_branch
          %206 = sbr.rel (%p204) target = $region24
        $region23: #{mixtral_mlp_prepared.1} parent=15 // pred_region
          %s207 = sand.u32 %s22, 1
          %s208 = scalar_lea.sflag [#allocation7], %s207
          %s209 = sand.u32 %s70, 1
          %s210 = smul.addr %s209, 64
          %s211 = scalar_lea.vmem [#allocation6], %s210
          %s213 = ssub.s32 1024, 1024
          %214 = vsyncadd %s208, %s213
          %s215 = smul.addr %s30, 16
          %s216 = smul.addr %s215, 64
          %s217 = scalar_lea.hbm %s1, %s216
          %s218 = sshll.u32 %s211, 4
          %s219 = int_to_ptr.vmem [resolvable:$true] %s218
          %224 = dma.hbm_to_vmem [thread:$0]  %s217, 1024, %s219, %s208, 64, 64, 4
        $region24: #{mixtral_mlp_prepared.1} parent=15 // pred_fallthru
          _
        // Predicated region
        $region25: #{mixtral_mlp_prepared.1} parent=15 // pred_check
          %p225 = pneg %p106
        $region26: #{mixtral_mlp_prepared.1} parent=15 // pred_check_branch
          %227 = sbr.rel (%p225) target = $region28
        $region27: #{mixtral_mlp_prepared.1} parent=15 // pred_region
          %s228 = sand.u32 %s22, 1
          %s229 = scalar_lea.sflag [#allocation7], %s228
          %s230 = sand.u32 %s96, 1
          %s231 = smul.addr %s230, 64
          %s232 = scalar_lea.vmem [#allocation8], %s231
          %s234 = ssub.s32 1024, 1024
          %235 = vsyncadd %s229, %s234
          %s236 = smul.addr %s30, 16
          %s237 = smul.addr %s236, 64
          %s238 = scalar_lea.hbm %s2, %s237
          %s239 = sshll.u32 %s232, 4
          %s240 = int_to_ptr.vmem [resolvable:$true] %s239
          %245 = dma.hbm_to_vmem [thread:$0]  %s238, 1024, %s240, %s229, 64, 64, 4
        $region28: #{mixtral_mlp_prepared.1} parent=15 // pred_fallthru
          _
        // Predicated region
        $region29: #{mixtral_mlp_prepared.1} parent=15 // pred_check
          %p246 = pneg %p132
        $region30: #{mixtral_mlp_prepared.1} parent=15 // pred_check_branch
          %248 = sbr.rel (%p246) target = $region32
        $region31: #{mixtral_mlp_prepared.1} parent=15 // pred_region
          %s249 = sand.u32 %s122, 1
          %s250 = scalar_lea.sflag [#allocation10], %s249
          %s251 = sand.u32 %s122, 1
          %s252 = smul.addr %s251, 64
          %s253 = scalar_lea.vmem [#allocation9], %s252
          %s254 = smul.u32 16, %s30
          %s256 = ssub.s32 1024, 1024
          %257 = vsyncadd %s250, %s256
          %s258 = smul.addr %s254, 64
          %s259 = scalar_lea.hbm %s3, %s258
          %s260 = sshll.u32 %s253, 4
          %s261 = int_to_ptr.vmem [resolvable:$true] %s260
          %266 = dma.hbm_to_vmem [thread:$0]  %s259, 1024, %s261, %s250, 64, 64, 4
        $region32: #{mixtral_mlp_prepared.1} parent=15 // pred_fallthru
          _
      $region16: #{mixtral_mlp_prepared.1} parent=5 // pred_fallthru
        _
      %p267 = scmp.le.s32.totalorder 1, %s22
      %p268 = scmp.lt.s32.totalorder %s22, 9
      %p269 = pnand %p267, %p268
      %p270 = pneg %p269
      // Predicated region
      $region33: #{mixtral_mlp_prepared.1} parent=5 // pred_check
        _
      $region34: #{mixtral_mlp_prepared.1} parent=5 // pred_check_branch
        %272 = sbr.rel (%p269) target = $region36
      $region35: #{mixtral_mlp_prepared.1} parent=5 // pred_region
        %s273 = ssub.s32 %s22, 1
        %s274 = sand.u32 %s47, 1
        %s275 = scalar_lea.sflag [#allocation4], %s274
        %s276 = sand.u32 %s47, 1
        %s277 = smul.addr %s276, 8
        %s278 = scalar_lea.vmem [#allocation3], %s277
        // Predicated region
        $region37: #{mixtral_mlp_prepared.1} parent=35 // pred_check
          %p279 = pneg %p60
        $region38: #{mixtral_mlp_prepared.1} parent=35 // pred_check_branch
          %281 = sbr.rel (%p279) target = $region40
        $region39: #{mixtral_mlp_prepared.1} parent=35 // pred_region
          %282 = dma.done %s275, 128
        $region40: #{mixtral_mlp_prepared.1} parent=35 // pred_fallthru
          _
        %s283 = sand.u32 %s27, 1
        %s284 = scalar_lea.sflag [#allocation7], %s283
        %s285 = sand.u32 %s73, 1
        %s286 = smul.addr %s285, 64
        %s287 = scalar_lea.vmem [#allocation6], %s286
        // Predicated region
        $region41: #{mixtral_mlp_prepared.1} parent=35 // pred_check
          %p288 = pneg %p86
        $region42: #{mixtral_mlp_prepared.1} parent=35 // pred_check_branch
          %290 = sbr.rel (%p288) target = $region44
        $region43: #{mixtral_mlp_prepared.1} parent=35 // pred_region
          %291 = dma.done %s284, 1024
        $region44: #{mixtral_mlp_prepared.1} parent=35 // pred_fallthru
          _
        %s292 = sand.u32 %s27, 1
        %s293 = scalar_lea.sflag [#allocation7], %s292
        %s294 = sand.u32 %s99, 1
        %s295 = smul.addr %s294, 64
        %s296 = scalar_lea.vmem [#allocation8], %s295
        // Predicated region
        $region45: #{mixtral_mlp_prepared.1} parent=35 // pred_check
          %p297 = pneg %p112
        $region46: #{mixtral_mlp_prepared.1} parent=35 // pred_check_branch
          %299 = sbr.rel (%p297) target = $region48
        $region47: #{mixtral_mlp_prepared.1} parent=35 // pred_region
          %300 = dma.done %s293, 1024
        $region48: #{mixtral_mlp_prepared.1} parent=35 // pred_fallthru
          _
        %s301 = sand.u32 %s125, 1
        %s302 = scalar_lea.sflag [#allocation10], %s301
        %s303 = sand.u32 %s125, 1
        %s304 = smul.addr %s303, 64
        %s305 = scalar_lea.vmem [#allocation9], %s304
        // Predicated region
        $region49: #{mixtral_mlp_prepared.1} parent=35 // pred_check
          %p306 = pneg %p138
        $region50: #{mixtral_mlp_prepared.1} parent=35 // pred_check_branch
          %308 = sbr.rel (%p306) target = $region52
        $region51: #{mixtral_mlp_prepared.1} parent=35 // pred_region
          %309 = dma.done %s302, 1024
        $region52: #{mixtral_mlp_prepared.1} parent=35 // pred_fallthru
          _
        %s310 = sand.u32 %s47, 1
        %s311 = scalar_lea.sflag [#allocation4], %s310
        %s312 = sand.u32 %s47, 1
        %s313 = smul.addr %s312, 8
        %s314 = scalar_lea.vmem [#allocation3], %s313
        %p315 = pneg %p60
        %p316 = pneg %p57
        %s317 = sand.u32 %s27, 1
        %s318 = scalar_lea.sflag [#allocation7], %s317
        %s319 = sand.u32 %s73, 1
        %s320 = smul.addr %s319, 64
        %s321 = scalar_lea.vmem [#allocation6], %s320
        %p322 = pneg %p86
        %p323 = pneg %p83
        %s324 = sand.u32 %s27, 1
        %s325 = scalar_lea.sflag [#allocation7], %s324
        %s326 = sand.u32 %s99, 1
        %s327 = smul.addr %s326, 64
        %s328 = scalar_lea.vmem [#allocation8], %s327
        %p329 = pneg %p112
        %p330 = pneg %p109
        %s331 = sand.u32 %s125, 1
        %s332 = scalar_lea.sflag [#allocation10], %s331
        %s333 = sand.u32 %s125, 1
        %s334 = smul.addr %s333, 64
        %s335 = scalar_lea.vmem [#allocation9], %s334
        %p336 = pneg %p138
        %p337 = pneg %p135
        %p338 = pneg %p164
        %p339 = pneg %p161
        %s340 = sand.u32 %s151, 1
        %s341 = scalar_lea.sflag [#allocation5], %s340
        %s342 = sand.u32 %s151, 1
        %s343 = smul.addr %s342, 8
        %s344 = scalar_lea.vmem [#allocation11], %s343
        %s345 = smul.u32 2, %s31
        %s346 = smul.u32 16, %s32
        %s347 = smul.u32 2, %s31
        %p349 = scmp.eq.s32.totalorder %s32, 0
        // Predicated region
        $region53: #{mixtral_mlp_prepared.1} parent=35 // pred_check
          %p350 = pneg %p349
        $region54: #{mixtral_mlp_prepared.1} parent=35 // pred_check_branch
          %352 = sbr.rel (%p350) target = $region56
        $region55: #{mixtral_mlp_prepared.1} parent=35 // pred_region
          %353 = vst [vmem:[#allocation2] sm:$0xff] 0.0
          %354 = vst [vmem:[#allocation2 + $0x8] sm:$0xff] 0.0
        $region56: #{mixtral_mlp_prepared.1} parent=35 // pred_fallthru
          _
        %v355 = vld [vmem:[%s278] sm:$0xf]
        %v356 = vld [vmem:[%s278 + $0x4] sm:$0xf]
        %v357 = vld [vmem:[%s287] sm:$0xf]
        %v358 = vld [vmem:[%s287 + $0x4] sm:$0xf]
        %v359 = vld [vmem:[%s287 + $0x8] sm:$0xf]
        %v360 = vld [vmem:[%s287 + $0xc] sm:$0xf]
        %v361 = vld [vmem:[%s287 + $0x10] sm:$0xf]
        %v362 = vld [vmem:[%s287 + $0x14] sm:$0xf]
        %v363 = vld [vmem:[%s287 + $0x18] sm:$0xf]
        %v364 = vld [vmem:[%s287 + $0x1c] sm:$0xf]
        %v365 = vld [vmem:[%s287 + $0x20] sm:$0xf]
        %v366 = vld [vmem:[%s287 + $0x24] sm:$0xf]
        %v367 = vld [vmem:[%s287 + $0x28] sm:$0xf]
        %v368 = vld [vmem:[%s287 + $0x2c] sm:$0xf]
        %v369 = vld [vmem:[%s287 + $0x30] sm:$0xf]
        %v370 = vld [vmem:[%s287 + $0x34] sm:$0xf]
        %v371 = vld [vmem:[%s287 + $0x38] sm:$0xf]
        %v372 = vld [vmem:[%s287 + $0x3c] sm:$0xf]
        %v375 = vunpack.c.l.b16 %v355
        %v376 = vunpack.c.l.b16 %v356
        %v377 = vpack.c.b16 %v376, %v375
        %v395 = vunpack.c.l.b16 %v357
        %v396 = vunpack.c.l.b16 %v358
        %v397 = vunpack.c.l.b16 %v359
        %v398 = vunpack.c.l.b16 %v360
        %v399 = vunpack.c.l.b16 %v361
        %v400 = vunpack.c.l.b16 %v362
        %v401 = vunpack.c.l.b16 %v363
        %v402 = vunpack.c.l.b16 %v364
        %v403 = vunpack.c.l.b16 %v365
        %v404 = vunpack.c.l.b16 %v366
        %v405 = vunpack.c.l.b16 %v367
        %v406 = vunpack.c.l.b16 %v368
        %v407 = vunpack.c.l.b16 %v369
        %v408 = vunpack.c.l.b16 %v370
        %v409 = vunpack.c.l.b16 %v371
        %v410 = vunpack.c.l.b16 %v372
        %v411 = vpack.c.b16 %v396, %v395
        %v412 = vpack.c.b16 %v398, %v397
        %v413 = vpack.c.b16 %v400, %v399
        %v414 = vpack.c.b16 %v402, %v401
        %v415 = vpack.c.b16 %v404, %v403
        %v416 = vpack.c.b16 %v406, %v405
        %v417 = vpack.c.b16 %v408, %v407
        %v418 = vpack.c.b16 %v410, %v409
        %427 = vmatprep.subr.bf16.mxu0 0
        %428 = vmatpush1.bf16.msra.mxu0 %v418
        %429 = vmatprep.subr.bf16.mxu0 0
        %430 = vmatpush1.bf16.msra.mxu0 %v417
        %431 = vmatprep.subr.bf16.mxu0 0
        %432 = vmatpush1.bf16.msra.mxu0 %v416
        %433 = vmatprep.subr.bf16.mxu0 0
        %434 = vmatpush1.bf16.msra.mxu0 %v415
        %435 = vmatprep.subr.bf16.mxu0 0
        %436 = vmatpush1.bf16.msra.mxu0 %v414
        %437 = vmatprep.subr.bf16.mxu0 0
        %438 = vmatpush1.bf16.msra.mxu0 %v413
        %439 = vmatprep.subr.bf16.mxu0 0
        %440 = vmatpush1.bf16.msra.mxu0 %v412
        %441 = vmatprep.subr.bf16.mxu0 0
        %442 = vmatpush1.bf16.msra.mxu0 %v411
        %443 = vmatprep.subr.bf16.mxu0 0
        %444 = vmatpush2.bf16.msra.mxu0 0
        %445 = vmatprep.subr.bf16.mxu0 0
        %446 = vmatpush2.bf16.msra.mxu0 0
        %447 = vmatprep.subr.bf16.mxu0 0
        %448 = vmatpush2.bf16.msra.mxu0 0
        %449 = vmatprep.subr.bf16.mxu0 0
        %450 = vmatpush2.bf16.msra.mxu0 0
        %451 = vmatprep.subr.bf16.mxu0 0
        %452 = vmatpush2.bf16.msra.mxu0 0
        %453 = vmatprep.subr.bf16.mxu0 0
        %454 = vmatpush2.bf16.msra.mxu0 0
        %455 = vmatprep.subr.bf16.mxu0 0
        %456 = vmatpush2.bf16.msra.mxu0 0
        %457 = vmatprep.subr.bf16.mxu0 0
        %458 = vmatpush2.bf16.msra.mxu0 0
        %459 = vmatprep.mubr.bf16.mxu0 0
        %460 = vmatmul.mubr.bf16.gmra.mxu0 %v377
        %v461 = vpop.f32.mrf.mxu0
        %v462 = vadd.f32 0.0, %v461
        %v463 = vpop.f32.mrf.mxu0
        %v464 = vpop.f32.mrf.mxu0
        %v465 = vadd.f32 0.0, %v464
        %v466 = vpop.f32.mrf.mxu0
        %467 = vdwg.mxu0
        %v468 = vld [vmem:[%s296] sm:$0xf]
        %v469 = vld [vmem:[%s296 + $0x4] sm:$0xf]
        %v470 = vld [vmem:[%s296 + $0x8] sm:$0xf]
        %v471 = vld [vmem:[%s296 + $0xc] sm:$0xf]
        %v472 = vld [vmem:[%s296 + $0x10] sm:$0xf]
        %v473 = vld [vmem:[%s296 + $0x14] sm:$0xf]
        %v474 = vld [vmem:[%s296 + $0x18] sm:$0xf]
        %v475 = vld [vmem:[%s296 + $0x1c] sm:$0xf]
        %v476 = vld [vmem:[%s296 + $0x20] sm:$0xf]
        %v477 = vld [vmem:[%s296 + $0x24] sm:$0xf]
        %v478 = vld [vmem:[%s296 + $0x28] sm:$0xf]
        %v479 = vld [vmem:[%s296 + $0x2c] sm:$0xf]
        %v480 = vld [vmem:[%s296 + $0x30] sm:$0xf]
        %v481 = vld [vmem:[%s296 + $0x34] sm:$0xf]
        %v482 = vld [vmem:[%s296 + $0x38] sm:$0xf]
        %v483 = vld [vmem:[%s296 + $0x3c] sm:$0xf]
        %v500 = vunpack.c.l.b16 %v468
        %v501 = vunpack.c.l.b16 %v469
        %v502 = vunpack.c.l.b16 %v470
        %v503 = vunpack.c.l.b16 %v471
        %v504 = vunpack.c.l.b16 %v472
        %v505 = vunpack.c.l.b16 %v473
        %v506 = vunpack.c.l.b16 %v474
        %v507 = vunpack.c.l.b16 %v475
        %v508 = vunpack.c.l.b16 %v476
        %v509 = vunpack.c.l.b16 %v477
        %v510 = vunpack.c.l.b16 %v478
        %v511 = vunpack.c.l.b16 %v479
        %v512 = vunpack.c.l.b16 %v480
        %v513 = vunpack.c.l.b16 %v481
        %v514 = vunpack.c.l.b16 %v482
        %v515 = vunpack.c.l.b16 %v483
        %v516 = vpack.c.b16 %v501, %v500
        %v517 = vpack.c.b16 %v503, %v502
        %v518 = vpack.c.b16 %v505, %v504
        %v519 = vpack.c.b16 %v507, %v506
        %v520 = vpack.c.b16 %v509, %v508
        %v521 = vpack.c.b16 %v511, %v510
        %v522 = vpack.c.b16 %v513, %v512
        %v523 = vpack.c.b16 %v515, %v514
        %532 = vmatprep.subr.bf16.mxu0 0
        %533 = vmatpush1.bf16.msra.mxu0 %v523
        %534 = vmatprep.subr.bf16.mxu0 0
        %535 = vmatpush1.bf16.msra.mxu0 %v522
        %536 = vmatprep.subr.bf16.mxu0 0
        %537 = vmatpush1.bf16.msra.mxu0 %v521
        %538 = vmatprep.subr.bf16.mxu0 0
        %539 = vmatpush1.bf16.msra.mxu0 %v520
        %540 = vmatprep.subr.bf16.mxu0 0
        %541 = vmatpush1.bf16.msra.mxu0 %v519
        %542 = vmatprep.subr.bf16.mxu0 0
        %543 = vmatpush1.bf16.msra.mxu0 %v518
        %544 = vmatprep.subr.bf16.mxu0 0
        %545 = vmatpush1.bf16.msra.mxu0 %v517
        %546 = vmatprep.subr.bf16.mxu0 0
        %547 = vmatpush1.bf16.msra.mxu0 %v516
        %548 = vmatprep.subr.bf16.mxu0 0
        %549 = vmatpush2.bf16.msra.mxu0 0
        %550 = vmatprep.subr.bf16.mxu0 0
        %551 = vmatpush2.bf16.msra.mxu0 0
        %552 = vmatprep.subr.bf16.mxu0 0
        %553 = vmatpush2.bf16.msra.mxu0 0
        %554 = vmatprep.subr.bf16.mxu0 0
        %555 = vmatpush2.bf16.msra.mxu0 0
        %556 = vmatprep.subr.bf16.mxu0 0
        %557 = vmatpush2.bf16.msra.mxu0 0
        %558 = vmatprep.subr.bf16.mxu0 0
        %559 = vmatpush2.bf16.msra.mxu0 0
        %560 = vmatprep.subr.bf16.mxu0 0
        %561 = vmatpush2.bf16.msra.mxu0 0
        %562 = vmatprep.subr.bf16.mxu0 0
        %563 = vmatpush2.bf16.msra.mxu0 0
        %564 = vmatprep.mubr.bf16.mxu0 0
        %565 = vmatmul.mubr.bf16.gmra.mxu0 %v377
        %v566 = vpop.f32.mrf.mxu0
        %v567 = vadd.f32 0.0, %v566
        %v568 = vpop.f32.mrf.mxu0
        %v569 = vpop.f32.mrf.mxu0
        %v570 = vadd.f32 0.0, %v569
        %v571 = vpop.f32.mrf.mxu0
        %572 = vdwg.mxu0
        %v573 = vxor.u32 %v462, 2147483648
        %v574 = vxor.u32 %v465, 2147483648
        %v575 = vmul.f32 %v573, 1.442695
        %v576 = vpow.pop %v575
        %v577 = vmul.f32 %v574, 1.442695
        %v578 = vpow.pop %v577
        %v579 = vadd.f32 %v576, 1.0
        %v580 = vadd.f32 %v578, 1.0
        %v581 = vrcp.pop %v579
        %v582 = vmul.f32 1.0, %v581
        %v583 = vrcp.pop %v580
        %v584 = vmul.f32 1.0, %v583
        %v585 = vmul.f32 %v462, %v582
        %v586 = vmul.f32 %v465, %v584
        %v587 = vmul.f32 %v585, %v567
        %v588 = vmul.f32 %v586, %v570
        %v589 = vpack.c.bf16 %v588, %v587
        %v590 = vld [vmem:[#allocation2] sm:$0xff]
        %v591 = vld [vmem:[#allocation2 + $0x8] sm:$0xff]
        %v592 = vld [vmem:[%s305] sm:$0xf]
        %v593 = vld [vmem:[%s305 + $0x4] sm:$0xf]
        %v594 = vld [vmem:[%s305 + $0x8] sm:$0xf]
        %v595 = vld [vmem:[%s305 + $0xc] sm:$0xf]
        %v596 = vld [vmem:[%s305 + $0x10] sm:$0xf]
        %v597 = vld [vmem:[%s305 + $0x14] sm:$0xf]
        %v598 = vld [vmem:[%s305 + $0x18] sm:$0xf]
        %v599 = vld [vmem:[%s305 + $0x1c] sm:$0xf]
        %v600 = vld [vmem:[%s305 + $0x20] sm:$0xf]
        %v601 = vld [vmem:[%s305 + $0x24] sm:$0xf]
        %v602 = vld [vmem:[%s305 + $0x28] sm:$0xf]
        %v603 = vld [vmem:[%s305 + $0x2c] sm:$0xf]
        %v604 = vld [vmem:[%s305 + $0x30] sm:$0xf]
        %v605 = vld [vmem:[%s305 + $0x34] sm:$0xf]
        %v606 = vld [vmem:[%s305 + $0x38] sm:$0xf]
        %v607 = vld [vmem:[%s305 + $0x3c] sm:$0xf]
        %v624 = vunpack.c.l.b16 %v592
        %v625 = vunpack.c.l.b16 %v593
        %v626 = vunpack.c.l.b16 %v594
        %v627 = vunpack.c.l.b16 %v595
        %v628 = vunpack.c.l.b16 %v596
        %v629 = vunpack.c.l.b16 %v597
        %v630 = vunpack.c.l.b16 %v598
        %v631 = vunpack.c.l.b16 %v599
        %v632 = vunpack.c.l.b16 %v600
        %v633 = vunpack.c.l.b16 %v601
        %v634 = vunpack.c.l.b16 %v602
        %v635 = vunpack.c.l.b16 %v603
        %v636 = vunpack.c.l.b16 %v604
        %v637 = vunpack.c.l.b16 %v605
        %v638 = vunpack.c.l.b16 %v606
        %v639 = vunpack.c.l.b16 %v607
        %v640 = vpack.c.b16 %v625, %v624
        %v641 = vpack.c.b16 %v627, %v626
        %v642 = vpack.c.b16 %v629, %v628
        %v643 = vpack.c.b16 %v631, %v630
        %v644 = vpack.c.b16 %v633, %v632
        %v645 = vpack.c.b16 %v635, %v634
        %v646 = vpack.c.b16 %v637, %v636
        %v647 = vpack.c.b16 %v639, %v638
        %656 = vmatprep.subr.bf16.mxu0 0
        %657 = vmatpush1.bf16.msra.mxu0 %v647
        %658 = vmatprep.subr.bf16.mxu0 0
        %659 = vmatpush1.bf16.msra.mxu0 %v646
        %660 = vmatprep.subr.bf16.mxu0 0
        %661 = vmatpush1.bf16.msra.mxu0 %v645
        %662 = vmatprep.subr.bf16.mxu0 0
        %663 = vmatpush1.bf16.msra.mxu0 %v644
        %664 = vmatprep.subr.bf16.mxu0 0
        %665 = vmatpush1.bf16.msra.mxu0 %v643
        %666 = vmatprep.subr.bf16.mxu0 0
        %667 = vmatpush1.bf16.msra.mxu0 %v642
        %668 = vmatprep.subr.bf16.mxu0 0
        %669 = vmatpush1.bf16.msra.mxu0 %v641
        %670 = vmatprep.subr.bf16.mxu0 0
        %671 = vmatpush1.bf16.msra.mxu0 %v640
        %672 = vmatprep.subr.bf16.mxu0 0
        %673 = vmatpush2.bf16.msra.mxu0 0
        %674 = vmatprep.subr.bf16.mxu0 0
        %675 = vmatpush2.bf16.msra.mxu0 0
        %676 = vmatprep.subr.bf16.mxu0 0
        %677 = vmatpush2.bf16.msra.mxu0 0
        %678 = vmatprep.subr.bf16.mxu0 0
        %679 = vmatpush2.bf16.msra.mxu0 0
        %680 = vmatprep.subr.bf16.mxu0 0
        %681 = vmatpush2.bf16.msra.mxu0 0
        %682 = vmatprep.subr.bf16.mxu0 0
        %683 = vmatpush2.bf16.msra.mxu0 0
        %684 = vmatprep.subr.bf16.mxu0 0
        %685 = vmatpush2.bf16.msra.mxu0 0
        %686 = vmatprep.subr.bf16.mxu0 0
        %687 = vmatpush2.bf16.msra.mxu0 0
        %688 = vmatprep.mubr.bf16.mxu0 0
        %689 = vmatmul.mubr.bf16.gmra.mxu0 %v589
        %v690 = vpop.f32.mrf.mxu0
        %v691 = vadd.f32 0.0, %v690
        %v692 = vpop.f32.mrf.mxu0
        %v693 = vpop.f32.mrf.mxu0
        %v694 = vadd.f32 0.0, %v693
        %v695 = vpop.f32.mrf.mxu0
        %696 = vdwg.mxu0
        %v697 = vadd.f32 %v590, %v691
        %v698 = vadd.f32 %v591, %v694
        %699 = vst [vmem:[#allocation2] sm:$0xff] %v697
        %700 = vst [vmem:[#allocation2 + $0x8] sm:$0xff] %v698
        %p701 = scmp.eq.s32.totalorder %s32, 3
        // Predicated region
        $region57: #{mixtral_mlp_prepared.1} parent=35 // pred_check
          %p702 = pneg %p701
        $region58: #{mixtral_mlp_prepared.1} parent=35 // pred_check_branch
          %704 = sbr.rel (%p702) target = $region60
        $region59: #{mixtral_mlp_prepared.1} parent=35 // pred_region
          %v705 = vld [vmem:[#allocation2] sm:$0xff]
          %v706 = vld [vmem:[#allocation2 + $0x8] sm:$0xff]
          %v707 = vpack.c.bf16 %v706, %v705
          %v709 = vunpack.c.l.b16 %v707
          %v710 = vunpack.c.h.b16 %v707
          %v711 = vpack.c.b16 %v709, %v709
          %v712 = vpack.c.b16 %v710, %v710
          %715 = vst [vmem:[%s344] sm:$0xf] %v711
          %716 = vst [vmem:[%s344 + $0x4] sm:$0xf] %v712
        $region60: #{mixtral_mlp_prepared.1} parent=35 // pred_fallthru
          _
        %s717 = sand.u32 %s151, 1
        %s718 = scalar_lea.sflag [#allocation5], %s717
        %s719 = sand.u32 %s151, 1
        %s720 = smul.addr %s719, 8
        %s721 = scalar_lea.vmem [#allocation11], %s720
        // Predicated region
        $region61: #{mixtral_mlp_prepared.1} parent=35 // pred_check
          %p722 = pneg %p161
        $region62: #{mixtral_mlp_prepared.1} parent=35 // pred_check_branch
          %724 = sbr.rel (%p722) target = $region64
        $region63: #{mixtral_mlp_prepared.1} parent=35 // pred_region
          %s725 = smul.u32 2, %s31
          %s727 = ssub.s32 128, 128
          %728 = vsyncadd %s718, %s727
          %s729 = smul.addr %s725, 64
          %s730 = scalar_lea.hbm %s4, %s729
          %s731 = sshll.u32 %s721, 4
          %s732 = int_to_ptr.vmem [resolvable:$true] %s731
          %737 = dma.vmem_to_hbm [thread:$0]  %s732, 128, %s730, %s718, 64, 64, 4
        $region64: #{mixtral_mlp_prepared.1} parent=35 // pred_fallthru
          _
      $region36: #{mixtral_mlp_prepared.1} parent=5 // pred_fallthru
        _
      %p738 = scmp.le.s32.totalorder 2, %s22
      // Predicated region
      $region65: #{mixtral_mlp_prepared.1} parent=5 // pred_check
        %p739 = pneg %p738
      $region66: #{mixtral_mlp_prepared.1} parent=5 // pred_check_branch
        %741 = sbr.rel (%p739) target = $region68
      $region67: #{mixtral_mlp_prepared.1} parent=5 // pred_region
        %s742 = ssub.s32 %s22, 2
        // Predicated region
        $region69: #{mixtral_mlp_prepared.1} parent=67 // pred_check
          %p743 = pneg %p167
        $region70: #{mixtral_mlp_prepared.1} parent=67 // pred_check_branch
          %745 = sbr.rel (%p743) target = $region72
        $region71: #{mixtral_mlp_prepared.1} parent=67 // pred_region
          %s746 = sand.u32 %s152, 1
          %s747 = scalar_lea.sflag [#allocation5], %s746
          %s748 = sand.u32 %s152, 1
          %s749 = smul.addr %s748, 8
          %s750 = scalar_lea.vmem [#allocation11], %s749
          %751 = dma.done %s747, 128
        $region72: #{mixtral_mlp_prepared.1} parent=67 // pred_fallthru
          _
      $region68: #{mixtral_mlp_prepared.1} parent=5 // pred_fallthru
        _
    $region6: #{mixtral_mlp_prepared.1} parent=1 // loop_footer
      %s26 = sadd.s32 1, %s22
    $region7: #{mixtral_mlp_prepared.1} parent=1 // loop_footer_branch
      %21 = sbr.rel target = $region3
    $region8: #{mixtral_mlp_prepared.1} parent=1 // loop_exit
      _
    %752 = vsyncpa [#allocation4], 1
    %s753 = scalar_lea.sflag [#allocation4], 1
    %754 = vsyncpa %s753, 1
    %755 = vsyncpa [#allocation7], 1
    %s756 = scalar_lea.sflag [#allocation7], 1
    %757 = vsyncpa %s756, 1
    %758 = vsyncpa [#allocation10], 1
    %s759 = scalar_lea.sflag [#allocation10], 1
    %760 = vsyncpa %s759, 1
    %761 = vsyncpa [#allocation5], 1
    %s762 = scalar_lea.sflag [#allocation5], 1
    %763 = vsyncpa %s762, 1

</llo_original>
